<compile_context>
chip_gen: v6e
topology: v6e:2x2x1
jax: 0.10.0
libtpu: 0.0.40
codegen_flags: <defaults>
</compile_context>

<pallas_src>
import functools

import jax
import jax.numpy as jnp
from jax import lax
from jax.experimental import pallas as pl
from jax.experimental.pallas import tpu as pltpu

QMIN, QMAX = -128.0, 127.0  # signed 8-bit affine quantization range


def calibrate(x):
    """Per-tensor int8 affine calibration (scale, zero_point) from min/max."""
    xmin = jnp.minimum(jnp.min(x), 0.0)
    xmax = jnp.maximum(jnp.max(x), 0.0)
    scale = jnp.maximum((xmax - xmin) / (QMAX - QMIN), 1e-8)
    zero_point = jnp.clip(jnp.round(QMIN - xmin / scale), QMIN, QMAX)
    return scale.astype(jnp.float32), zero_point.astype(jnp.float32)


def _fake_quantize(v, scale, zero_point):
    q = jnp.clip(jnp.round(v / scale) + zero_point, QMIN, QMAX)
    return (q - zero_point) * scale


def _quantize_centered_bf16(v, scale, zero_point):
    """(q - zp) as bf16.  Integer-valued in [-255, 255] -> bit-exact in bf16."""
    q = jnp.clip(jnp.round(v / scale) + zero_point, QMIN, QMAX)
    return (q - zero_point).astype(jnp.bfloat16)


def _round_up(x, m):
    return ((x + m - 1) // m) * m


def qat_matmul_kernel(scale_ref, x_ref, w_ref, b_ref, o_ref):
    """bf16 (q - zp) matmul; scale + bias folded into the last k step.

    x_ref: (tm, tk) bf16   integer-valued (q_x - zp_x)
    w_ref: (tn, tk) bf16   integer-valued (q_w - zp_w), PyTorch (N, K) layout
    b_ref: (1, tn)  f32    bias tile
    o_ref: (tm, tn) f32    output tile, resident across the k axis
    scale_ref: (1,) f32 in SMEM, = s_x * s_w
    """
    k = pl.program_id(2)

    @pl.when(k == 0)
    def _():
        o_ref[...] = jnp.zeros_like(o_ref)

    o_ref[...] += lax.dot_general(
        x_ref[...],
        w_ref[...],
        dimension_numbers=(((1,), (1,)), ((), ())),   # contract K of both
        preferred_element_type=jnp.float32,
    )

    @pl.when(k == pl.num_programs(2) - 1)
    def _():
        o_ref[...] = o_ref[...] * scale_ref[0] + b_ref[...]


@functools.partial(jax.jit, static_argnames=("tm", "tk", "tn"))
def qat_linear(x, weight, bias, *, tm=256, tk=512, tn=256):
    """x: (M, K) f32; weight: (N, K) f32 (PyTorch layout); bias: (N,) f32."""
    M, K = x.shape
    N, K2 = weight.shape
    assert K == K2

    # --- prologue (plain XLA, mem-bound): calibrate + one-shot quantization ---
    x_scale, x_zp = calibrate(x)
    w_scale, w_zp = calibrate(weight)
    xq = _quantize_centered_bf16(x, x_scale, x_zp)        # (M, K) bf16
    wq = _quantize_centered_bf16(weight, w_scale, w_zp)   # (N, K) bf16, no transpose
    out_scale = (x_scale * w_scale).reshape(1).astype(jnp.float32)

    # --- tile selection (shapes are static under jit) ---
    tm_e = min(tm, _round_up(M, 16))    # bf16 sublane packing multiple
    tn_e = min(tn, _round_up(N, 128))   # lane-dense output
    tk_e = min(tk, _round_up(K, 128))

    Mp = _round_up(M, tm_e)
    Np = _round_up(N, tn_e)
    Kp = _round_up(K, tk_e)

    # Zero padding is exact: padded (q - zp) entries are 0 and contribute
    # nothing to the contraction; padded output rows/cols are sliced away.
    xq = jnp.pad(xq, ((0, Mp - M), (0, Kp - K)))
    wq = jnp.pad(wq, ((0, Np - N), (0, Kp - K)))
    b2 = jnp.pad(bias.astype(jnp.float32), (0, Np - N)).reshape(1, Np)

    grid = (Mp // tm_e, Np // tn_e, Kp // tk_e)

    out = pl.pallas_call(
        qat_matmul_kernel,
        out_shape=jax.ShapeDtypeStruct((Mp, Np), jnp.float32),
        grid_spec=pltpu.PrefetchScalarGridSpec(
            num_scalar_prefetch=0,
            grid=grid,
            in_specs=[
                pl.BlockSpec(memory_space=pltpu.MemorySpace.SMEM),    # s_x*s_w
                pl.BlockSpec((tm_e, tk_e), lambda i, j, k: (i, k)),   # xq tile
                pl.BlockSpec((tn_e, tk_e), lambda i, j, k: (j, k)),   # wq tile (N,K)
                pl.BlockSpec((1, tn_e), lambda i, j, k: (0, j)),      # bias tile
            ],
            out_specs=pl.BlockSpec((tm_e, tn_e), lambda i, j, k: (i, j)),
        ),
        compiler_params=pltpu.CompilerParams(
            dimension_semantics=("parallel", "parallel", "arbitrary"),
        ),
    )(out_scale, xq, wq, b2)

    return out[:M, :N]


def qat_linear_reference(x, weight, bias):
    xs, xz = calibrate(x)
    ws, wz = calibrate(weight)
    xq = _fake_quantize(x, xs, xz)
    wq = _fake_quantize(weight, ws, wz)
    return xq @ wq.T + bias[None, :]


if __name__ == "__main__":
    key = jax.random.PRNGKey(0)

    # Small Linear: batch=16, in_features=256, out_features=128
    batch, in_features, out_features = 16, 256, 128
    kx, kw, kb = jax.random.split(key, 3)
    x = jax.random.normal(kx, (batch, in_features), dtype=jnp.float32)
    bound = 1.0 / (in_features ** 0.5)
    weight = jax.random.uniform(
        kw, (out_features, in_features), minval=-bound, maxval=bound,
        dtype=jnp.float32)
    bias = jax.random.uniform(
        kb, (out_features,), minval=-bound, maxval=bound, dtype=jnp.float32)

    out = qat_linear(x, weight, bias)
    out = jax.block_until_ready(out)
    ref = qat_linear_reference(x, weight, bias)
    assert out.shape == (batch, out_features)
    assert jnp.allclose(out, ref, rtol=1e-3, atol=1e-3), "mismatch vs reference"

    # Non-tile-aligned shapes (exercises cdiv grid + zero padding path).
    b2_, in2, out2 = 20, 200, 72
    kx2, kw2, kb2 = jax.random.split(jax.random.PRNGKey(1), 3)
    x2 = jax.random.normal(kx2, (b2_, in2), dtype=jnp.float32)
    bound2 = 1.0 / (in2 ** 0.5)
    w2 = jax.random.uniform(kw2, (out2, in2), minval=-bound2, maxval=bound2,
                            dtype=jnp.float32)
    bb2 = jax.random.uniform(kb2, (out2,), minval=-bound2, maxval=bound2,
                             dtype=jnp.float32)
    o2 = jax.block_until_ready(qat_linear(x2, w2, bb2))
    r2 = qat_linear_reference(x2, w2, bb2)
    assert o2.shape == (b2_, out2)
    assert jnp.allclose(o2, r2, rtol=1e-3, atol=1e-3), "mismatch (padded path)"

    print("KERNEL_OK")
</pallas_src>

<mosaic_0001>
module attributes {stable_mosaic.version = 11 : i64} {
  func.func @qat_matmul_kernel(%arg0: i32, %arg1: i32, %arg2: i32, %arg3: memref<1xf32, #tpu.memory_space<smem>>, %arg4: memref<16x256xbf16, #tpu.memory_space<vmem>>, %arg5: memref<128x256xbf16, #tpu.memory_space<vmem>>, %arg6: memref<1x128xf32, #tpu.memory_space<vmem>>, %arg7: memref<16x128xf32, #tpu.memory_space<vmem>>) attributes {dimension_semantics = [#tpu.dimension_semantics<parallel>, #tpu.dimension_semantics<parallel>, #tpu.dimension_semantics<arbitrary>], iteration_bounds = array<i64: 1, 1, 1>, scalar_prefetch = 0 : i64, scratch_operands = 0 : i64, tpu.core_type = #tpu.core_type<tc>, window_params = [{transform_indices = @transform_0, window_bounds = array<i64: 1>}, {transform_indices = @transform_1, window_bounds = array<i64: 16, 256>}, {transform_indices = @transform_2, window_bounds = array<i64: 128, 256>}, {transform_indices = @transform_3, window_bounds = array<i64: 1, 128>}, {transform_indices = @transform_4, window_bounds = array<i64: 16, 128>}]} {
    %c0_i32 = arith.constant 0 : i32
    %0 = arith.cmpi eq, %arg2, %c0_i32 : i32
    %1 = arith.extui %0 : i1 to i32
    %c0_i32_0 = arith.constant 0 : i32
    %2 = arith.cmpi ne, %1, %c0_i32_0 : i32
    scf.if %2 {
      %cst_10 = arith.constant 0.000000e+00 : f32
      %12 = vector.broadcast %cst_10 : f32 to vector<16x128xf32>
      %c0_11 = arith.constant 0 : index
      %c0_12 = arith.constant 0 : index
      %13 = vector.load %arg7[%c0_11, %c0_12] : memref<16x128xf32, #tpu.memory_space<vmem>>, vector<16x128xf32>
      tpu.vector_store %arg7[%c0_11, %c0_12], %12 {strides = array<i32>} : memref<16x128xf32, #tpu.memory_space<vmem>>, vector<16x128xf32>,
    } else {
    }
    %c0 = arith.constant 0 : index
    %c0_1 = arith.constant 0 : index
    %3 = vector.load %arg7[%c0, %c0_1] : memref<16x128xf32, #tpu.memory_space<vmem>>, vector<16x128xf32>
    %c0_2 = arith.constant 0 : index
    %c0_3 = arith.constant 0 : index
    %4 = vector.load %arg4[%c0_2, %c0_3] : memref<16x256xbf16, #tpu.memory_space<vmem>>, vector<16x256xbf16>
    %c0_4 = arith.constant 0 : index
    %c0_5 = arith.constant 0 : index
    %5 = vector.load %arg5[%c0_4, %c0_5] : memref<128x256xbf16, #tpu.memory_space<vmem>>, vector<128x256xbf16>
    %cst = arith.constant dense<0.000000e+00> : vector<16x128xf32>
    %6 = tpu.matmul %4, %5, %cst {dimension_numbers = #tpu.dot_dimension_numbers<[1], [1], [0], [0], [0, 0, 1, 0], [], []>} : vector<16x256xbf16>, vector<128x256xbf16>, vector<16x128xf32> -> vector<16x128xf32>
    %7 = arith.addf %3, %6 : vector<16x128xf32>
    %c0_6 = arith.constant 0 : index
    %c0_7 = arith.constant 0 : index
    %8 = vector.load %arg7[%c0_6, %c0_7] : memref<16x128xf32, #tpu.memory_space<vmem>>, vector<16x128xf32>
    tpu.vector_store %arg7[%c0_6, %c0_7], %7 {strides = array<i32>} : memref<16x128xf32, #tpu.memory_space<vmem>>, vector<16x128xf32>,
    %c0_i32_8 = arith.constant 0 : i32
    %9 = arith.cmpi eq, %arg2, %c0_i32_8 : i32
    %10 = arith.extui %9 : i1 to i32
    %c0_i32_9 = arith.constant 0 : i32
    %11 = arith.cmpi ne, %10, %c0_i32_9 : i32
    scf.if %11 {
      %c0_10 = arith.constant 0 : index
      %c0_11 = arith.constant 0 : index
      %12 = vector.load %arg7[%c0_10, %c0_11] : memref<16x128xf32, #tpu.memory_space<vmem>>, vector<16x128xf32>
      %c0_12 = arith.constant 0 : index
      %13 = memref.load %arg3[%c0_12] : memref<1xf32, #tpu.memory_space<smem>>
      %14 = vector.broadcast %13 : f32 to vector<16x128xf32>
      %15 = arith.mulf %12, %14 : vector<16x128xf32>
      %c0_13 = arith.constant 0 : index
      %c0_14 = arith.constant 0 : index
      %16 = vector.load %arg6[%c0_13, %c0_14] : memref<1x128xf32, #tpu.memory_space<vmem>>, vector<1x128xf32>
      %17 = vector.broadcast %16 : vector<1x128xf32> to vector<16x128xf32>
      %18 = arith.addf %15, %17 : vector<16x128xf32>
      %c0_15 = arith.constant 0 : index
      %c0_16 = arith.constant 0 : index
      %19 = vector.load %arg7[%c0_15, %c0_16] : memref<16x128xf32, #tpu.memory_space<vmem>>, vector<16x128xf32>
      tpu.vector_store %arg7[%c0_15, %c0_16], %18 {strides = array<i32>} : memref<16x128xf32, #tpu.memory_space<vmem>>, vector<16x128xf32>,
    } else {
    }
    return
  }
  func.func @transform_0(%arg0: i32, %arg1: i32, %arg2: i32) -> i32 {
    %c0_i32 = arith.constant 0 : i32
    %c0_i32_0 = arith.constant 0 : i32
    return %c0_i32 : i32
  }
  func.func @transform_1(%arg0: i32, %arg1: i32, %arg2: i32) -> (i32, i32) {
    %c0_i32 = arith.constant 0 : i32
    return %arg0, %arg2 : i32, i32
  }
  func.func @transform_2(%arg0: i32, %arg1: i32, %arg2: i32) -> (i32, i32) {
    %c0_i32 = arith.constant 0 : i32
    return %arg1, %arg2 : i32, i32
  }
  func.func @transform_3(%arg0: i32, %arg1: i32, %arg2: i32) -> (i32, i32) {
    %c0_i32 = arith.constant 0 : i32
    %c0_i32_0 = arith.constant 0 : i32
    return %c0_i32, %arg1 : i32, i32
  }
  func.func @transform_4(%arg0: i32, %arg1: i32, %arg2: i32) -> (i32, i32) {
    %c0_i32 = arith.constant 0 : i32
    return %arg0, %arg1 : i32, i32
  }
}

</mosaic_0001>

<llo_original>
// kernel: qat_linear.1
$region0: #{qat_linear.1}
  #allocation0 [shape = 'u32[]', space=smem, size = 0x4, offset = 0x4, fixed_abs, tag = 'smem constant byte address 0x4 - core index']
  #allocation1 [shape = 'u32[144,128]{1,0:T(1,128)}', space=vmem, size = 0x12000, scoped, tag = 'internal scratch']
  #allocation2 [shape = 'f32[1]{0:T(128)S(6)}', space=smem, size = 0x200, scoped, tag = 'scoped memory for qat_linear.1']
  %s0 = inlined_call_operand.<no memory space> [shape: f32[1], index: 0, kind: input, shape index: {}]
  %s1 = inlined_call_operand.vmem [shape: bf16[16,256], index: 1, kind: input, shape index: {}]
  %s2 = inlined_call_operand.vmem [shape: bf16[128,256], index: 2, kind: input, shape index: {}]
  %s3 = inlined_call_operand.vmem [shape: f32[1,128], index: 3, kind: input, shape index: {}]
  %s4 = inlined_call_operand.hbm [shape: f32[16,128], index: 4, kind: output, shape index: {}]
  %s5 = sld [smem:[#allocation0]]
  $region34: #{qat_linear.1} parent=0
    _
  %s7 = ssub.s32 1, %s5
  %s8 = scalar_select 0, %s7, %s5
  %9 = sst [smem:[#allocation2]] %s0
  $region1: #{qat_linear.1} parent=0
    #allocation3 [shape = 'u8[8192]{0}', space=vmem, size = 0x2000, scoped, tag = 'output window, operand 0, single buffered']
    #allocation4 [shape = 's32[1]{0}', space=sflag, size = 0x4, scoped, tag = 'scoped memory for qat_linear.1']
    %10 = vsyncpa [#allocation4], 0
    // Predicated region
    $region2: #{qat_linear.1} parent=1 // pred_check
      _
    $region3: #{qat_linear.1} parent=1 // pred_check_branch
      %12 = sbr.rel (0) target = $region5
    $region4: #{qat_linear.1} parent=1 // pred_region
      _
    $region5: #{qat_linear.1} parent=1 // pred_fallthru
      _
    // Predicated region
    $region6: #{qat_linear.1} parent=1 // pred_check
      _
    $region7: #{qat_linear.1} parent=1 // pred_check_branch
      %14 = sbr.rel (0) target = $region9
    $region8: #{qat_linear.1} parent=1 // pred_region
      _
    $region9: #{qat_linear.1} parent=1 // pred_fallthru
      _
    // Predicated region
    $region10: #{qat_linear.1} parent=1 // pred_check
      _
    $region11: #{qat_linear.1} parent=1 // pred_check_branch
      %16 = sbr.rel (0) target = $region13
    $region12: #{qat_linear.1} parent=1 // pred_region
      _
    $region13: #{qat_linear.1} parent=1 // pred_fallthru
      _
    // Predicated region
    $region14: #{qat_linear.1} parent=1 // pred_check
      _
    $region15: #{qat_linear.1} parent=1 // pred_check_branch
      %18 = sbr.rel (0) target = $region17
    $region16: #{qat_linear.1} parent=1 // pred_region
      _
    $region17: #{qat_linear.1} parent=1 // pred_fallthru
      _
    %p20 = scmp.eq.s32.totalorder 0, 0
    // Predicated region
    $region18: #{qat_linear.1} parent=1 // pred_check
      %p21 = pneg %p20
    $region19: #{qat_linear.1} parent=1 // pred_check_branch
      %23 = sbr.rel (%p21) target = $region21
    $region20: #{qat_linear.1} parent=1 // pred_region
      %24 = vst [vmem:[#allocation3] sm:$0xff] 0.0
      %25 = vst [vmem:[#allocation3 + $0x8] sm:$0xff] 0.0
    $region21: #{qat_linear.1} parent=1 // pred_fallthru
      _
    %v26 = vld [vmem:[#allocation3] sm:$0xff]
    %v27 = vld [vmem:[#allocation3 + $0x8] sm:$0xff]
    %v28 = vld [vmem:[%s1] sm:$0xff]
    %v29 = vld [vmem:[%s1 + $0x8] sm:$0xff]
    %v30 = vld [vmem:[%s2] sm:$0xff]
    %v31 = vld [vmem:[%s2 + $0x8] sm:$0xff]
    %v32 = vld [vmem:[%s2 + $0x10] sm:$0xff]
    %v33 = vld [vmem:[%s2 + $0x18] sm:$0xff]
    %v34 = vld [vmem:[%s2 + $0x20] sm:$0xff]
    %v35 = vld [vmem:[%s2 + $0x28] sm:$0xff]
    %v36 = vld [vmem:[%s2 + $0x30] sm:$0xff]
    %v37 = vld [vmem:[%s2 + $0x38] sm:$0xff]
    %v38 = vld [vmem:[%s2 + $0x40] sm:$0xff]
    %v39 = vld [vmem:[%s2 + $0x48] sm:$0xff]
    %v40 = vld [vmem:[%s2 + $0x50] sm:$0xff]
    %v41 = vld [vmem:[%s2 + $0x58] sm:$0xff]
    %v42 = vld [vmem:[%s2 + $0x60] sm:$0xff]
    %v43 = vld [vmem:[%s2 + $0x68] sm:$0xff]
    %v44 = vld [vmem:[%s2 + $0x70] sm:$0xff]
    %v45 = vld [vmem:[%s2 + $0x78] sm:$0xff]
    %v48 = vunpack.c.l.b16 %v28
    %v49 = vunpack.c.h.b16 %v28
    %v50 = vunpack.c.l.b16 %v29
    %v51 = vunpack.c.h.b16 %v29
    %v52 = vpack.c.b16 %v50, %v48
    %v53 = vpack.c.b16 %v51, %v49
    %v72 = vunpack.c.l.b16 %v30
    %v73 = vunpack.c.h.b16 %v30
    %v74 = vunpack.c.l.b16 %v31
    %v75 = vunpack.c.h.b16 %v31
    %v76 = vunpack.c.l.b16 %v32
    %v77 = vunpack.c.h.b16 %v32
    %v78 = vunpack.c.l.b16 %v33
    %v79 = vunpack.c.h.b16 %v33
    %v80 = vunpack.c.l.b16 %v34
    %v81 = vunpack.c.h.b16 %v34
    %v82 = vunpack.c.l.b16 %v35
    %v83 = vunpack.c.h.b16 %v35
    %v84 = vunpack.c.l.b16 %v36
    %v85 = vunpack.c.h.b16 %v36
    %v86 = vunpack.c.l.b16 %v37
    %v87 = vunpack.c.h.b16 %v37
    %v88 = vunpack.c.l.b16 %v38
    %v89 = vunpack.c.h.b16 %v38
    %v90 = vunpack.c.l.b16 %v39
    %v91 = vunpack.c.h.b16 %v39
    %v92 = vunpack.c.l.b16 %v40
    %v93 = vunpack.c.h.b16 %v40
    %v94 = vunpack.c.l.b16 %v41
    %v95 = vunpack.c.h.b16 %v41
    %v96 = vunpack.c.l.b16 %v42
    %v97 = vunpack.c.h.b16 %v42
    %v98 = vunpack.c.l.b16 %v43
    %v99 = vunpack.c.h.b16 %v43
    %v100 = vunpack.c.l.b16 %v44
    %v101 = vunpack.c.h.b16 %v44
    %v102 = vunpack.c.l.b16 %v45
    %v103 = vunpack.c.h.b16 %v45
    %v104 = vpack.c.b16 %v74, %v72
    %v105 = vpack.c.b16 %v75, %v73
    %v106 = vpack.c.b16 %v78, %v76
    %v107 = vpack.c.b16 %v79, %v77
    %v108 = vpack.c.b16 %v82, %v80
    %v109 = vpack.c.b16 %v83, %v81
    %v110 = vpack.c.b16 %v86, %v84
    %v111 = vpack.c.b16 %v87, %v85
    %v112 = vpack.c.b16 %v90, %v88
    %v113 = vpack.c.b16 %v91, %v89
    %v114 = vpack.c.b16 %v94, %v92
    %v115 = vpack.c.b16 %v95, %v93
    %v116 = vpack.c.b16 %v98, %v96
    %v117 = vpack.c.b16 %v99, %v97
    %v118 = vpack.c.b16 %v102, %v100
    %v119 = vpack.c.b16 %v103, %v101
    %136 = vmatprep.subr.bf16.mxu0 %v119
    %137 = vmatpush1.bf16.xpose.msra.mxu0 %v118
    %138 = vmatprep.subr.bf16.mxu0 %v117
    %139 = vmatpush1.bf16.xpose.msra.mxu0 %v116
    %140 = vmatprep.subr.bf16.mxu0 %v115
    %141 = vmatpush1.bf16.xpose.msra.mxu0 %v114
    %142 = vmatprep.subr.bf16.mxu0 %v113
    %143 = vmatpush1.bf16.xpose.msra.mxu0 %v112
    %144 = vmatprep.subr.bf16.mxu0 %v111
    %145 = vmatpush1.bf16.xpose.msra.mxu0 %v110
    %146 = vmatprep.subr.bf16.mxu0 %v109
    %147 = vmatpush1.bf16.xpose.msra.mxu0 %v108
    %148 = vmatprep.subr.bf16.mxu0 %v107
    %149 = vmatpush1.bf16.xpose.msra.mxu0 %v106
    %150 = vmatprep.subr.bf16.mxu0 %v105
    %151 = vmatpush1.bf16.xpose.msra.mxu0 %v104
    %152 = vmatprep.subr.bf16.mxu0 0
    %153 = vmatpush2.bf16.xpose.msra.mxu0 0
    %154 = vmatprep.subr.bf16.mxu0 0
    %155 = vmatpush2.bf16.xpose.msra.mxu0 0
    %156 = vmatprep.subr.bf16.mxu0 0
    %157 = vmatpush2.bf16.xpose.msra.mxu0 0
    %158 = vmatprep.subr.bf16.mxu0 0
    %159 = vmatpush2.bf16.xpose.msra.mxu0 0
    %160 = vmatprep.subr.bf16.mxu0 0
    %161 = vmatpush2.bf16.xpose.msra.mxu0 0
    %162 = vmatprep.subr.bf16.mxu0 0
    %163 = vmatpush2.bf16.xpose.msra.mxu0 0
    %164 = vmatprep.subr.bf16.mxu0 0
    %165 = vmatpush2.bf16.xpose.msra.mxu0 0
    %166 = vmatprep.subr.bf16.mxu0 0
    %167 = vmatpush2.bf16.xpose.msra.mxu0 0
    %168 = vmatprep.mubr.bf16.mxu0 %v53
    %169 = vmatmul.mubr.bf16.gmra.mxu0 %v52
    %v170 = vpop.f32.mrf.mxu0
    %v171 = vadd.f32 0.0, %v170
    %v172 = vpop.f32.mrf.mxu0
    %v173 = vpop.f32.mrf.mxu0
    %v174 = vadd.f32 0.0, %v173
    %v175 = vpop.f32.mrf.mxu0
    %176 = vdwg.mxu0
    %v177 = vadd.f32 %v26, %v171
    %v178 = vadd.f32 %v27, %v174
    %179 = vst [vmem:[#allocation3] sm:$0xff] %v177
    %180 = vst [vmem:[#allocation3 + $0x8] sm:$0xff] %v178
    // Predicated region
    $region22: #{qat_linear.1} parent=1 // pred_check
      %p181 = pneg %p20
    $region23: #{qat_linear.1} parent=1 // pred_check_branch
      %183 = sbr.rel (%p181) target = $region25
    $region24: #{qat_linear.1} parent=1 // pred_region
      %v184 = vld [vmem:[#allocation3] sm:$0xff]
      %v185 = vld [vmem:[#allocation3 + $0x8] sm:$0xff]
      %s186 = sld [smem:[#allocation2]]
      %v187 = vstv %s186
      %v188 = vmul.f32 %v184, %v187
      %v189 = vmul.f32 %v185, %v187
      %v190 = vld [vmem:[%s3] sm:$0x1]
      %v192 = vlaneseq
      %v193 = vshrl.u32 %v192, 7
      %v194 = vsub.s32 0, %v193
      %v195 = vrot.slane %v190, %v194
      %v197 = vadd.f32 %v188, %v195
      %v198 = vadd.f32 %v189, %v195
      %199 = vst [vmem:[#allocation3] sm:$0xff] %v197
      %200 = vst [vmem:[#allocation3 + $0x8] sm:$0xff] %v198
    $region25: #{qat_linear.1} parent=1 // pred_fallthru
      _
    // Predicated region
    $region26: #{qat_linear.1} parent=1 // pred_check
      _
    $region27: #{qat_linear.1} parent=1 // pred_check_branch
      %202 = sbr.rel (0) target = $region29
    $region28: #{qat_linear.1} parent=1 // pred_region
      %s204 = ssub.s32 256, 256
      %205 = vsyncadd [#allocation4], %s204
      %s206 = sshll.u32 [#allocation3], 4
      %s207 = int_to_ptr.vmem [resolvable:$true] %s206
      %212 = dma.vmem_to_hbm [thread:$0]  %s207, 256, %s4, [#allocation4], 128, 128, 8
    $region29: #{qat_linear.1} parent=1 // pred_fallthru
      _
    // Predicated region
    $region30: #{qat_linear.1} parent=1 // pred_check
      _
    $region31: #{qat_linear.1} parent=1 // pred_check_branch
      %214 = sbr.rel (0) target = $region33
    $region32: #{qat_linear.1} parent=1 // pred_region
      %215 = dma.done [#allocation4], 256
    $region33: #{qat_linear.1} parent=1 // pred_fallthru
      _
    %216 = vsyncpa [#allocation4], 1

</llo_original>
